<compile_context>
chip_gen: v5e
topology: v5e:2x2
jax: 0.10.0
libtpu: 0.0.40
codegen_flags: <defaults>
</compile_context>

<pallas_src>
import functools

import jax
import jax.numpy as jnp
from jax.experimental import pallas as pl
from jax.experimental.pallas import tpu as pltpu


def _smooth_ce_kernel(pred_ref, tgt_ref, sum_ref, cnt_ref, *, eps, n_valid):
    p = pred_ref[...].astype(jnp.float32)          # (TN, C)
    t = tgt_ref[...]                               # (TN, 1) int32
    tn, c = p.shape

    # log-softmax pieces along the class (lane) axis
    m = jnp.max(p, axis=1, keepdims=True)                          # (TN, 1)
    z = p - m                                                      # (TN, C)
    lse = jnp.log(jnp.sum(jnp.exp(z), axis=1, keepdims=True))      # (TN, 1)

    # Smoothed one-hot weights folded into ONE weighted lane-reduction:
    #   w_ij = (1 - eps) if j == target_i else eps / (C - 1);  sum_j w_ij == 1
    #   loss_i = -sum_j w_ij * (z_ij - lse_i) = lse_i - sum_j w_ij * z_ij
    class_ids = jax.lax.broadcasted_iota(jnp.int32, z.shape, 1)    # (TN, C)
    w = jnp.where(class_ids == t, 1.0 - eps, eps / (c - 1))
    weighted = jnp.sum(w * z, axis=1, keepdims=True)               # (TN, 1)
    loss = lse - weighted                                          # (TN, 1)

    # Mask the garbage rows of a ragged trailing tile + non-finite rows,
    # then reduce the tile to two scalars (sum of finite losses, finite count).
    row = jax.lax.broadcasted_iota(jnp.int32, (tn, 1), 0)
    valid = (pl.program_id(0) * tn + row) < n_valid
    keep = jnp.logical_and(valid, jnp.isfinite(loss))
    tile_sum = jnp.sum(jnp.where(keep, loss, 0.0))
    tile_cnt = jnp.sum(keep.astype(jnp.float32))

    sum_ref[...] = jnp.broadcast_to(tile_sum, sum_ref.shape)
    cnt_ref[...] = jnp.broadcast_to(tile_cnt, cnt_ref.shape)


def _round_up(x, m):
    return (x + m - 1) // m * m


def _cdiv(a, b):
    return -(-a // b)


def _sublane_multiple(dtype):
    itemsize = jnp.dtype(dtype).itemsize
    return {4: 8, 2: 16, 1: 32}.get(itemsize, 8)


def _vmem_limit_bytes():
    # v5e/v6e: 128 MiB VMEM per TensorCore, v7x: 64 MiB. Stay well under
    # physical so Mosaic keeps scratch/pipelining headroom on every chip.
    cap = None
    try:
        cap = getattr(pltpu.get_tpu_info(), "vmem_capacity_bytes", None)
    except Exception:
        cap = None
    if not cap:
        cap = 64 << 20                     # conservative (v7x) fallback
    return int(min(48 << 20, cap * 3 // 4))


def _choose_tile_n(n, c, dtype, tile_n, working_budget_bytes):
    sl = _sublane_multiple(dtype)
    if n <= sl:
        return n                            # single block equal to full dim
    itemsize = jnp.dtype(dtype).itemsize
    # Real per-row VMEM footprint: 2x double-buffered input row + ~4 f32 temps
    # (z, exp(z), weights, weighted product) from the in-kernel f32 math.
    per_row_bytes = max(1, c * (2 * itemsize + 4 * 4))
    if tile_n is None:
        tile_n = working_budget_bytes // per_row_bytes
    tile_n = max(sl, int(tile_n))
    tile_n = _round_up(min(tile_n, _round_up(n, sl)), sl)
    # Guarantee >= 2 grid steps whenever possible: the "parallel" grid axis is
    # how work shards across v7x's two TensorCores.
    if tile_n >= n:
        tile_n = max(sl, _round_up(_cdiv(n, 2), sl))
    return tile_n


def smooth_ce_loss(pred, target, smoothing_ratio=0.1, tile_n=None):
    """pred: (N, C) float, target: (N,) int. Returns scalar float32 loss."""
    n, c = pred.shape
    if c < 2:
        raise ValueError("SmoothCELoss needs at least 2 classes (eps/(C-1)).")

    vmem_limit = _vmem_limit_bytes()
    working_budget = max(1 << 20, vmem_limit // 3)
    tile_n = _choose_tile_n(n, c, pred.dtype, tile_n, working_budget)
    grid_n = _cdiv(n, tile_n)

    tgt2 = target.astype(jnp.int32).reshape(n, 1)

    kernel = functools.partial(
        _smooth_ce_kernel, eps=float(smoothing_ratio), n_valid=n)

    partial_shape = jax.ShapeDtypeStruct((grid_n, 8, 128), jnp.float32)
    sums, cnts = pl.pallas_call(
        kernel,
        out_shape=(partial_shape, partial_shape),
        grid_spec=pltpu.PrefetchScalarGridSpec(
            num_scalar_prefetch=0,
            grid=(grid_n,),
            in_specs=[
                pl.BlockSpec((tile_n, c), lambda i: (i, 0)),
                pl.BlockSpec((tile_n, 1), lambda i: (i, 0)),
            ],
            out_specs=[
                pl.BlockSpec((1, 8, 128), lambda i: (i, 0, 0)),
                pl.BlockSpec((1, 8, 128), lambda i: (i, 0, 0)),
            ],
        ),
        compiler_params=pltpu.CompilerParams(
            dimension_semantics=("parallel",),      # no cross-step carry
            vmem_limit_bytes=vmem_limit),
    )(pred, tgt2)

    # Matches reference: mean over finite per-row losses (NaN if none finite).
    total = jnp.sum(sums[:, 0, 0])
    count = jnp.sum(cnts[:, 0, 0])
    return total / count


def _reference(pred, target, eps=0.1):
    n_class = pred.shape[1]
    one_hot = jax.nn.one_hot(target, n_class, dtype=jnp.float32)
    smoothed = one_hot * (1.0 - eps) + (1.0 - one_hot) * eps / (n_class - 1)
    log_prb = jax.nn.log_softmax(pred.astype(jnp.float32), axis=1)
    loss = -(smoothed * log_prb).sum(axis=1)
    finite = jnp.isfinite(loss)
    return jnp.sum(jnp.where(finite, loss, 0.0)) / jnp.sum(finite)


if __name__ == "__main__":
    key = jax.random.PRNGKey(0)
    k_pred, k_tgt = jax.random.split(key)

    N, C = 16, 32                     # N samples, C classes
    pred = jax.random.normal(k_pred, (N, C), dtype=jnp.float32)
    target = jax.random.randint(k_tgt, (N,), 0, C, dtype=jnp.int32)

    loss = smooth_ce_loss(pred, target, smoothing_ratio=0.1)
    loss = jax.block_until_ready(loss)

    ref = _reference(pred, target, eps=0.1)
    assert jnp.allclose(loss, ref, rtol=1e-5, atol=1e-5), (loss, ref)

    # Ragged / multi-tile path: N not a multiple of the tile (tail masked
    # in-kernel, no padding, 3 grid steps).
    N2 = 37
    pred2 = jax.random.normal(k_pred, (N2, C), dtype=jnp.float32)
    target2 = jax.random.randint(k_tgt, (N2,), 0, C, dtype=jnp.int32)
    loss2 = jax.block_until_ready(
        smooth_ce_loss(pred2, target2, smoothing_ratio=0.1, tile_n=16))
    ref2 = _reference(pred2, target2, eps=0.1)
    assert jnp.allclose(loss2, ref2, rtol=1e-5, atol=1e-5), (loss2, ref2)

    print("KERNEL_OK")
</pallas_src>

<mosaic_0001>
module attributes {stable_mosaic.version = 11 : i64} {
  func.func @_smooth_ce_kernel(%arg0: i32, %arg1: memref<8x32xf32, #tpu.memory_space<vmem>>, %arg2: memref<8x1xi32, #tpu.memory_space<vmem>>, %arg3: memref<1x8x128xf32, #tpu.memory_space<vmem>>, %arg4: memref<1x8x128xf32, #tpu.memory_space<vmem>>) attributes {dimension_semantics = [#tpu.dimension_semantics<parallel>], iteration_bounds = array<i64: 2>, scalar_prefetch = 0 : i64, scratch_operands = 0 : i64, tpu.core_type = #tpu.core_type<tc>, window_params = [{transform_indices = @transform_0, window_bounds = array<i64: 8, 32>}, {transform_indices = @transform_1, window_bounds = array<i64: 8, 1>}, {transform_indices = @transform_2, window_bounds = array<i64: 1, 8, 128>}, {transform_indices = @transform_3, window_bounds = array<i64: 1, 8, 128>}]} {
    %c0 = arith.constant 0 : index
    %c0_0 = arith.constant 0 : index
    %0 = vector.load %arg1[%c0, %c0_0] : memref<8x32xf32, #tpu.memory_space<vmem>>, vector<8x32xf32>
    %c0_1 = arith.constant 0 : index
    %c0_2 = arith.constant 0 : index
    %1 = vector.load %arg2[%c0_1, %c0_2] : memref<8x1xi32, #tpu.memory_space<vmem>>, vector<8x1xi32>
    %cst = arith.constant dense<0xFF800000> : vector<8xf32>
    %2 = vector.multi_reduction <maximumf>, %0, %cst [1] : vector<8x32xf32> to vector<8xf32>
    %3 = vector.shape_cast %2 : vector<8xf32> to vector<8x1xf32>
    %4 = vector.broadcast %3 : vector<8x1xf32> to vector<8x32xf32>
    %5 = arith.subf %0, %4 : vector<8x32xf32>
    %6 = math.exp %5 : vector<8x32xf32>
    %cst_3 = arith.constant dense<0.000000e+00> : vector<8xf32>
    %7 = vector.multi_reduction <add>, %6, %cst_3 [1] : vector<8x32xf32> to vector<8xf32>
    %8 = vector.shape_cast %7 : vector<8xf32> to vector<8x1xf32>
    %9 = math.log %8 : vector<8x1xf32>
    %10 = tpu.iota {dimensions = array<i32: 1>} : vector<8x32xi32>
    %11 = vector.broadcast %1 : vector<8x1xi32> to vector<8x32xi32>
    %12 = arith.cmpi eq, %10, %11 : vector<8x32xi32>
    %cst_4 = arith.constant 0.899999976 : f32
    %cst_5 = arith.constant 0.0032258064 : f32
    %13 = vector.broadcast %cst_4 : f32 to vector<8x32xf32>
    %14 = vector.broadcast %cst_5 : f32 to vector<8x32xf32>
    %15 = arith.select %12, %13, %14 : vector<8x32xi1>, vector<8x32xf32>
    %16 = arith.mulf %15, %5 : vector<8x32xf32>
    %cst_6 = arith.constant dense<0.000000e+00> : vector<8xf32>
    %17 = vector.multi_reduction <add>, %16, %cst_6 [1] : vector<8x32xf32> to vector<8xf32>
    %18 = vector.shape_cast %17 : vector<8xf32> to vector<8x1xf32>
    %19 = arith.subf %9, %18 : vector<8x1xf32>
    %20 = tpu.iota {dimensions = array<i32: 0>} : vector<8x1xi32>
    %c8_i32 = arith.constant 8 : i32
    %21 = arith.muli %arg0, %c8_i32 : i32
    %22 = vector.broadcast %21 : i32 to vector<8x1xi32>
    %23 = arith.addi %22, %20 : vector<8x1xi32>
    %c16_i32 = arith.constant 16 : i32
    %24 = vector.broadcast %c16_i32 : i32 to vector<8x1xi32>
    %25 = arith.cmpi slt, %23, %24 : vector<8x1xi32>
    %26 = tpu.weird %19 : vector<8x1xf32> -> vector<8x1xi1>
    %cst_7 = arith.constant dense<true> : vector<8x1xi1>
    %27 = arith.xori %26, %cst_7 : vector<8x1xi1>
    %28 = arith.andi %25, %27 : vector<8x1xi1>
    %cst_8 = arith.constant 0.000000e+00 : f32
    %29 = vector.broadcast %cst_8 : f32 to vector<8x1xf32>
    %30 = arith.select %28, %19, %29 : vector<8x1xi1>, vector<8x1xf32>
    %31 = vector.shape_cast %30 : vector<8x1xf32> to vector<1x8x1xf32>
    %cst_9 = arith.constant dense<0.000000e+00> : vector<1xf32>
    %32 = vector.multi_reduction <add>, %31, %cst_9 [1, 2] : vector<1x8x1xf32> to vector<1xf32>
    %33 = vector.shape_cast %32 : vector<1xf32> to vector<1x1x1xf32>
    %34 = vector.extract %33[0, 0, 0] : f32 from vector<1x1x1xf32>
    %35 = arith.extui %28 : vector<8x1xi1> to vector<8x1xi32>
    %36 = arith.sitofp %35 : vector<8x1xi32> to vector<8x1xf32>
    %37 = vector.shape_cast %36 : vector<8x1xf32> to vector<1x8x1xf32>
    %cst_10 = arith.constant dense<0.000000e+00> : vector<1xf32>
    %38 = vector.multi_reduction <add>, %37, %cst_10 [1, 2] : vector<1x8x1xf32> to vector<1xf32>
    %39 = vector.shape_cast %38 : vector<1xf32> to vector<1x1x1xf32>
    %40 = vector.extract %39[0, 0, 0] : f32 from vector<1x1x1xf32>
    %41 = vector.broadcast %34 : f32 to vector<1x8x128xf32>
    %c0_11 = arith.constant 0 : index
    %c0_12 = arith.constant 0 : index
    %c0_13 = arith.constant 0 : index
    %42 = vector.load %arg3[%c0_11, %c0_12, %c0_13] : memref<1x8x128xf32, #tpu.memory_space<vmem>>, vector<1x8x128xf32>
    tpu.vector_store %arg3[%c0_11, %c0_12, %c0_13], %41 {strides = array<i32>} : memref<1x8x128xf32, #tpu.memory_space<vmem>>, vector<1x8x128xf32>,
    %43 = vector.broadcast %40 : f32 to vector<1x8x128xf32>
    %c0_14 = arith.constant 0 : index
    %c0_15 = arith.constant 0 : index
    %c0_16 = arith.constant 0 : index
    %44 = vector.load %arg4[%c0_14, %c0_15, %c0_16] : memref<1x8x128xf32, #tpu.memory_space<vmem>>, vector<1x8x128xf32>
    tpu.vector_store %arg4[%c0_14, %c0_15, %c0_16], %43 {strides = array<i32>} : memref<1x8x128xf32, #tpu.memory_space<vmem>>, vector<1x8x128xf32>,
    return
  }
  func.func @transform_0(%arg0: i32) -> (i32, i32) {
    %c0_i32 = arith.constant 0 : i32
    %c0_i32_0 = arith.constant 0 : i32
    return %arg0, %c0_i32 : i32, i32
  }
  func.func @transform_1(%arg0: i32) -> (i32, i32) {
    %c0_i32 = arith.constant 0 : i32
    %c0_i32_0 = arith.constant 0 : i32
    return %arg0, %c0_i32 : i32, i32
  }
  func.func @transform_2(%arg0: i32) -> (i32, i32, i32) {
    %c0_i32 = arith.constant 0 : i32
    %c0_i32_0 = arith.constant 0 : i32
    %c0_i32_1 = arith.constant 0 : i32
    return %arg0, %c0_i32, %c0_i32_0 : i32, i32, i32
  }
  func.func @transform_3(%arg0: i32) -> (i32, i32, i32) {
    %c0_i32 = arith.constant 0 : i32
    %c0_i32_0 = arith.constant 0 : i32
    %c0_i32_1 = arith.constant 0 : i32
    return %arg0, %c0_i32, %c0_i32_0 : i32, i32, i32
  }
}

</mosaic_0001>

<llo_original>
// kernel: tpu_custom_call.1
$region0: #{tpu_custom_call.1}
  #allocation0 [shape = 'u32[]', space=smem, size = 0x4, offset = 0x4, fixed_abs, tag = 'smem constant byte address 0x4 - core index']
  #allocation1 [shape = 'u32[72,128]{1,0:T(1,128)}', space=vmem, size = 0x9000, scoped, tag = 'internal scratch']
  %s0 = inlined_call_operand.vmem [shape: f32[16,32], index: 0, kind: input, shape index: {}]
  %s1 = inlined_call_operand.vmem [shape: s32[16,1], index: 1, kind: input, shape index: {}]
  %s2 = inlined_call_operand.hbm [shape: f32[2,8,128], index: 2, kind: output, shape index: {0}]
  %s3 = inlined_call_operand.hbm [shape: f32[2,8,128], index: 3, kind: output, shape index: {1}]
  %4 = xla_tuple %s2, %s3
  %s5 = sld [smem:[#allocation0]]
  $region49: #{tpu_custom_call.1} parent=0
    _
  %s7 = ssub.s32 1, %s5
  %s8 = scalar_select 0, %s7, %s5
  $region1: #{tpu_custom_call.1} parent=0
    #allocation2 [shape = 'u8[8192]{0}', space=vmem, size = 0x2000, scoped, tag = 'output window, operand 0']
    #allocation3 [shape = 's32[2]{0}', space=sflag, size = 0x8, scoped, tag = 'scoped memory for tpu_custom_call.1']
    #allocation4 [shape = 'u8[8192]{0}', space=vmem, size = 0x2000, scoped, tag = 'output window, operand 1']
    #allocation5 [shape = 's32[2]{0}', space=sflag, size = 0x8, scoped, tag = 'scoped memory for tpu_custom_call.1']
    %9 = vsyncpa [#allocation3], 0
    %s10 = scalar_lea.sflag [#allocation3], 1
    %11 = vsyncpa %s10, 0
    %12 = vsyncpa [#allocation5], 0
    %s13 = scalar_lea.sflag [#allocation5], 1
    %14 = vsyncpa %s13, 0
    loop: start=0, step=1, limit=4
    $region2: #{tpu_custom_call.1} parent=1 // loop_pre_header
      _
    $region3: #{tpu_custom_call.1} parent=1 // loop_header
      %s16 = sphi 0, %s20
      %p17 = scmp.ge.s32.totalorder %s16, 4
      %s26 = sphi 0, %s28
      %s29 = sphi 0, %s26
      %s30 = sphi 0, %s29
      %s46 = sphi 0, %s30
      %s52 = sphi 0, %s54
      %s55 = sphi 0, %s52
      %s56 = sphi 0, %s55
      %s72 = sphi 0, %s56
      %s78 = sphi 0, %s80
      %s81 = sphi 0, %s78
      %s82 = sphi 0, %s81
      %s98 = sphi 0, %s82
      %s104 = sphi 0, %s106
      %s107 = sphi 0, %s104
      %s108 = sphi 0, %s107
      %s124 = sphi 0, %s108
    $region4: #{tpu_custom_call.1} parent=1 // loop_header_branch
      %19 = sbr.rel (%p17) target = $region8
    $region5: #{tpu_custom_call.1} parent=1 // loop_body
      %s21 = ssub.s32 %s16, 1
      %s22 = ssub.s32 %s16, 2
      %s23 = sadd.s32 %s16, 1
      %s24 = ssub.s32 %s16, %s23
      %p25 = scmp.eq.s32.totalorder %s24, 0
      %s27 = sadd.s32 %s26, 1
      %s28 = scalar_select %p25, %s26, %s27
      %p31 = pneg %p25
      %p32 = scmp.eq.s32.totalorder %s16, 1
      %p33 = por %p31, %p32
      %p34 = scmp.ne.s32.totalorder %s26, %s29
      %p35 = scmp.eq.s32.totalorder %s16, 0
      %p36 = por %p34, %p35
      %p37 = scmp.ne.s32.totalorder %s26, %s29
      %p38 = scmp.eq.s32.totalorder %s21, 1
      %p39 = por %p37, %p38
      %p40 = scmp.ne.s32.totalorder %s29, %s30
      %p41 = scmp.eq.s32.totalorder %s21, 0
      %p42 = por %p40, %p41
      %p43 = scmp.ne.s32.totalorder %s29, %s30
      %p44 = scmp.eq.s32.totalorder %s22, 1
      %p45 = por %p43, %p44
      %p47 = scmp.ne.s32.totalorder %s30, %s46
      %p48 = scmp.eq.s32.totalorder %s22, 0
      %p49 = por %p47, %p48
      %s50 = ssub.s32 %s16, %s23
      %p51 = scmp.eq.s32.totalorder %s50, 0
      %s53 = sadd.s32 %s52, 1
      %s54 = scalar_select %p51, %s52, %s53
      %p57 = pneg %p51
      %p58 = scmp.eq.s32.totalorder %s16, 1
      %p59 = por %p57, %p58
      %p60 = scmp.ne.s32.totalorder %s52, %s55
      %p61 = scmp.eq.s32.totalorder %s16, 0
      %p62 = por %p60, %p61
      %p63 = scmp.ne.s32.totalorder %s52, %s55
      %p64 = scmp.eq.s32.totalorder %s21, 1
      %p65 = por %p63, %p64
      %p66 = scmp.ne.s32.totalorder %s55, %s56
      %p67 = scmp.eq.s32.totalorder %s21, 0
      %p68 = por %p66, %p67
      %p69 = scmp.ne.s32.totalorder %s55, %s56
      %p70 = scmp.eq.s32.totalorder %s22, 1
      %p71 = por %p69, %p70
      %p73 = scmp.ne.s32.totalorder %s56, %s72
      %p74 = scmp.eq.s32.totalorder %s22, 0
      %p75 = por %p73, %p74
      %s76 = ssub.s32 %s16, %s23
      %p77 = scmp.eq.s32.totalorder %s76, 0
      %s79 = sadd.s32 %s78, 1
      %s80 = scalar_select %p77, %s78, %s79
      %p83 = pneg %p77
      %p84 = scmp.eq.s32.totalorder %s16, 1
      %p85 = por %p83, %p84
      %p86 = scmp.ne.s32.totalorder %s78, %s81
      %p87 = scmp.eq.s32.totalorder %s16, 0
      %p88 = por %p86, %p87
      %p89 = scmp.ne.s32.totalorder %s78, %s81
      %p90 = scmp.eq.s32.totalorder %s21, 1
      %p91 = por %p89, %p90
      %p92 = scmp.ne.s32.totalorder %s81, %s82
      %p93 = scmp.eq.s32.totalorder %s21, 0
      %p94 = por %p92, %p93
      %p95 = scmp.ne.s32.totalorder %s81, %s82
      %p96 = scmp.eq.s32.totalorder %s22, 1
      %p97 = por %p95, %p96
      %p99 = scmp.ne.s32.totalorder %s82, %s98
      %p100 = scmp.eq.s32.totalorder %s22, 0
      %p101 = por %p99, %p100
      %s102 = ssub.s32 %s16, %s23
      %p103 = scmp.eq.s32.totalorder %s102, 0
      %s105 = sadd.s32 %s104, 1
      %s106 = scalar_select %p103, %s104, %s105
      %p109 = pneg %p103
      %p110 = scmp.eq.s32.totalorder %s16, 1
      %p111 = por %p109, %p110
      %p112 = scmp.ne.s32.totalorder %s104, %s107
      %p113 = scmp.eq.s32.totalorder %s16, 0
      %p114 = por %p112, %p113
      %p115 = scmp.ne.s32.totalorder %s104, %s107
      %p116 = scmp.eq.s32.totalorder %s21, 1
      %p117 = por %p115, %p116
      %p118 = scmp.ne.s32.totalorder %s107, %s108
      %p119 = scmp.eq.s32.totalorder %s21, 0
      %p120 = por %p118, %p119
      %p121 = scmp.ne.s32.totalorder %s107, %s108
      %p122 = scmp.eq.s32.totalorder %s22, 1
      %p123 = por %p121, %p122
      %p125 = scmp.ne.s32.totalorder %s108, %s124
      %p126 = scmp.eq.s32.totalorder %s22, 0
      %p127 = por %p125, %p126
      %p128 = scmp.le.s32.totalorder 1, %s16
      %p129 = scmp.lt.s32.totalorder %s16, 3
      %p130 = pnand %p128, %p129
      %p131 = pneg %p130
      // Predicated region
      $region9: #{tpu_custom_call.1} parent=5 // pred_check
        _
      $region10: #{tpu_custom_call.1} parent=5 // pred_check_branch
        %133 = sbr.rel (%p130) target = $region12
      $region11: #{tpu_custom_call.1} parent=5 // pred_region
        %s134 = ssub.s32 %s16, 1
      $region12: #{tpu_custom_call.1} parent=5 // pred_fallthru
        _
      %p135 = scmp.lt.s32.totalorder %s16, 2
      // Predicated region
      $region13: #{tpu_custom_call.1} parent=5 // pred_check
        %p136 = pneg %p135
      $region14: #{tpu_custom_call.1} parent=5 // pred_check_branch
        %138 = sbr.rel (%p136) target = $region16
      $region15: #{tpu_custom_call.1} parent=5 // pred_region
        // Predicated region
        $region17: #{tpu_custom_call.1} parent=15 // pred_check
          %p139 = pneg %p36
        $region18: #{tpu_custom_call.1} parent=15 // pred_check_branch
          %141 = sbr.rel (%p139) target = $region20
        $region19: #{tpu_custom_call.1} parent=15 // pred_region
          %p142 = scmp.lt.s32.totalorder %s16, 1
          %s143 = scalar_select %p142, %s16, 1
          %s144 = smul.addr %s143, 8
          %s145 = scalar_lea.vmem %s0, %s144
        $region20: #{tpu_custom_call.1} parent=15 // pred_fallthru
          _
        // Predicated region
        $region21: #{tpu_custom_call.1} parent=15 // pred_check
          %p146 = pneg %p62
        $region22: #{tpu_custom_call.1} parent=15 // pred_check_branch
          %148 = sbr.rel (%p146) target = $region24
        $region23: #{tpu_custom_call.1} parent=15 // pred_region
          %p149 = scmp.lt.s32.totalorder %s16, 1
          %s150 = scalar_select %p149, %s16, 1
          %s151 = smul.addr %s150, 8
          %s152 = scalar_lea.vmem %s1, %s151
        $region24: #{tpu_custom_call.1} parent=15 // pred_fallthru
          _
      $region16: #{tpu_custom_call.1} parent=5 // pred_fallthru
        _
      %p153 = scmp.le.s32.totalorder 1, %s16
      %p154 = scmp.lt.s32.totalorder %s16, 3
      %p155 = pnand %p153, %p154
      %p156 = pneg %p155
      // Predicated region
      $region25: #{tpu_custom_call.1} parent=5 // pred_check
        _
      $region26: #{tpu_custom_call.1} parent=5 // pred_check_branch
        %158 = sbr.rel (%p155) target = $region28
      $region27: #{tpu_custom_call.1} parent=5 // pred_region
        %s159 = ssub.s32 %s16, 1
        %p160 = scmp.lt.s32.totalorder %s21, 1
        %s161 = scalar_select %p160, %s21, 1
        %s162 = smul.addr %s161, 8
        %s163 = scalar_lea.vmem %s0, %s162
        %p164 = pneg %p42
        %p165 = pneg %p39
        %p166 = scmp.lt.s32.totalorder %s21, 1
        %s167 = scalar_select %p166, %s21, 1
        %s168 = smul.addr %s167, 8
        %s169 = scalar_lea.vmem %s1, %s168
        %p170 = pneg %p68
        %p171 = pneg %p65
        %p172 = pneg %p94
        %p173 = pneg %p91
        %s174 = sand.u32 %s81, 1
        %s175 = scalar_lea.sflag [#allocation3], %s174
        %s176 = sand.u32 %s81, 1
        %s177 = smul.addr %s176, 8
        %s178 = scalar_lea.vmem [#allocation2], %s177
        %p179 = pneg %p120
        %p180 = pneg %p117
        %s181 = sand.u32 %s107, 1
        %s182 = scalar_lea.sflag [#allocation5], %s181
        %s183 = sand.u32 %s107, 1
        %s184 = smul.addr %s183, 8
        %s185 = scalar_lea.vmem [#allocation4], %s184
        %p186 = scmp.lt.s32.totalorder %s21, 1
        %s187 = scalar_select %p186, %s21, 1
        %s188 = smul.addr %s187, 8
        %s189 = scalar_lea.vmem %s0, %s188
        %p190 = scmp.lt.s32.totalorder %s21, 1
        %s191 = scalar_select %p190, %s21, 1
        %s192 = smul.addr %s191, 8
        %s193 = scalar_lea.vmem %s1, %s192
        %v194 = vld [vmem:[%s189] sm:$0xff]
        %v195 = vld [vmem:[%s193] sm:$0xff]
        %vm196 = vcmask 261120
        %v197 = vsel %vm196, %v194, -inf
        %198 = vmax.xlane.f32.xlu0 %v197
        %v199 = vpop.xlane.xlu0 %198
        %v200 = vsub.f32 %v194, %v199
        %v201 = vmul.f32 %v200, 1.442695
        %v202 = vpow.pop %v201
        %v203 = vsel %vm196, %v202, 0.0
        %204 = vadd.xlane.f32.xlu0 %v203
        %v205 = vpop.xlane.xlu0 %204
        %v206 = vlog2.pop %v205
        %v207 = vmul.f32 %v206, 0.6931472
        %v208 = vlaneseq
        %v209 = vand.u32 %v208, 127
        %210 = vset.pattern.permute.xlu0 0
        %211 = vperm.xlu0 %210, %v195
        %v212 = vpop.permute.xlu0 %211
        %vm213 = vcmp.eq.s32.totalorder %v209, %v212
        %v214 = vsel %vm213, 0.9, 0.0032258064
        %v215 = vmul.f32 %v214, %v200
        %v216 = vsel %vm196, %v215, 0.0
        %217 = vadd.xlane.f32.xlu0 %v216
        %v218 = vpop.xlane.xlu0 %217
        %v219 = vsub.f32 %v207, %v218
        %v220 = vlaneseq
        %v221 = vshrl.u32 %v220, 7
        %s222 = smul.u32 %s21, 8
        %v223 = vstv %s222
        %v224 = vadd.s32 %v223, %v221
        %vm225 = vcmp.lt.s32.totalorder %v224, 16
        %vm226 = vweird.f32 %v219
        %vm227 = vmxor %vm226, 1
        %vm228 = vmand %vm225, %vm227
        %v229 = vsel %vm228, %v219, 0.0
        %vm230 = vcmask 7168
        %v231 = vsel %vm230, %v229, 0.0
        %232 = vadd.xlane.f32.xlu0 %v231
        %v233 = vpop.xlane.xlu0 %232
        %v234 = vrot.slane %v233, 4
        %v235 = vadd.f32 %v233, %v234
        %v236 = vrot.slane %v235, 2
        %v237 = vadd.f32 %v235, %v236
        %v238 = vrot.slane %v237, 1
        %v239 = vadd.f32 %v237, %v238
        %s240 = vtos %v239
        %v241 = vsel %vm228, 1, 0
        %v242 = vcvt.s32.f32 %v241
        %v243 = vsel %vm230, %v242, 0.0
        %244 = vadd.xlane.f32.xlu0 %v243
        %v245 = vpop.xlane.xlu0 %244
        %v246 = vrot.slane %v245, 4
        %v247 = vadd.f32 %v245, %v246
        %v248 = vrot.slane %v247, 2
        %v249 = vadd.f32 %v247, %v248
        %v250 = vrot.slane %v249, 1
        %v251 = vadd.f32 %v249, %v250
        %s252 = vtos %v251
        %v253 = vstv %s240
        %254 = vst [vmem:[%s178] sm:$0xff] %v253
        %v255 = vstv %s252
        %256 = vst [vmem:[%s185] sm:$0xff] %v255
        %s257 = sand.u32 %s81, 1
        %s258 = scalar_lea.sflag [#allocation3], %s257
        %s259 = sand.u32 %s81, 1
        %s260 = smul.addr %s259, 8
        %s261 = scalar_lea.vmem [#allocation2], %s260
        %s262 = sand.u32 %s107, 1
        %s263 = scalar_lea.sflag [#allocation5], %s262
        %s264 = sand.u32 %s107, 1
        %s265 = smul.addr %s264, 8
        %s266 = scalar_lea.vmem [#allocation4], %s265
        // Predicated region
        $region29: #{tpu_custom_call.1} parent=27 // pred_check
          %p267 = pneg %p91
        $region30: #{tpu_custom_call.1} parent=27 // pred_check_branch
          %269 = sbr.rel (%p267) target = $region32
        $region31: #{tpu_custom_call.1} parent=27 // pred_region
          %271 = vsyncadd %s258, 0
          %s272 = smul.addr %s21, 8
          %s273 = scalar_lea.hbm %s2, %s272
          %s275 = sshll.u32 %s261, 4
          %s276 = int_to_ptr.vmem [resolvable:$true] %s275
          %s277 = sshll.u32 %s273, 4
          %s278 = int_to_ptr.hbm [resolvable:$true] %s277
          %280 = dma.vmem_to_hbm [thread:$0]  %s276, 128, %s278, %s258
        $region32: #{tpu_custom_call.1} parent=27 // pred_fallthru
          _
        // Predicated region
        $region33: #{tpu_custom_call.1} parent=27 // pred_check
          %p281 = pneg %p117
        $region34: #{tpu_custom_call.1} parent=27 // pred_check_branch
          %283 = sbr.rel (%p281) target = $region36
        $region35: #{tpu_custom_call.1} parent=27 // pred_region
          %285 = vsyncadd %s263, 0
          %s286 = smul.addr %s21, 8
          %s287 = scalar_lea.hbm %s3, %s286
          %s289 = sshll.u32 %s266, 4
          %s290 = int_to_ptr.vmem [resolvable:$true] %s289
          %s291 = sshll.u32 %s287, 4
          %s292 = int_to_ptr.hbm [resolvable:$true] %s291
          %294 = dma.vmem_to_hbm [thread:$0]  %s290, 128, %s292, %s263
        $region36: #{tpu_custom_call.1} parent=27 // pred_fallthru
          _
      $region28: #{tpu_custom_call.1} parent=5 // pred_fallthru
        _
      %p295 = scmp.le.s32.totalorder 2, %s16
      // Predicated region
      $region37: #{tpu_custom_call.1} parent=5 // pred_check
        %p296 = pneg %p295
      $region38: #{tpu_custom_call.1} parent=5 // pred_check_branch
        %298 = sbr.rel (%p296) target = $region40
      $region39: #{tpu_custom_call.1} parent=5 // pred_region
        %s299 = ssub.s32 %s16, 2
        // Predicated region
        $region41: #{tpu_custom_call.1} parent=39 // pred_check
          %p300 = pneg %p97
        $region42: #{tpu_custom_call.1} parent=39 // pred_check_branch
          %302 = sbr.rel (%p300) target = $region44
        $region43: #{tpu_custom_call.1} parent=39 // pred_region
          %s303 = sand.u32 %s82, 1
          %s304 = scalar_lea.sflag [#allocation3], %s303
          %s305 = sand.u32 %s82, 1
          %s306 = smul.addr %s305, 8
          %s307 = scalar_lea.vmem [#allocation2], %s306
          %309 = dma.done %s304, 128
        $region44: #{tpu_custom_call.1} parent=39 // pred_fallthru
          _
        // Predicated region
        $region45: #{tpu_custom_call.1} parent=39 // pred_check
          %p310 = pneg %p123
        $region46: #{tpu_custom_call.1} parent=39 // pred_check_branch
          %312 = sbr.rel (%p310) target = $region48
        $region47: #{tpu_custom_call.1} parent=39 // pred_region
          %s313 = sand.u32 %s108, 1
          %s314 = scalar_lea.sflag [#allocation5], %s313
          %s315 = sand.u32 %s108, 1
          %s316 = smul.addr %s315, 8
          %s317 = scalar_lea.vmem [#allocation4], %s316
          %319 = dma.done %s314, 128
        $region48: #{tpu_custom_call.1} parent=39 // pred_fallthru
          _
      $region40: #{tpu_custom_call.1} parent=5 // pred_fallthru
        _
    $region6: #{tpu_custom_call.1} parent=1 // loop_footer
      %s20 = sadd.s32 1, %s16
    $region7: #{tpu_custom_call.1} parent=1 // loop_footer_branch
      %15 = sbr.rel target = $region3
    $region8: #{tpu_custom_call.1} parent=1 // loop_exit
      _
    %320 = vsyncpa [#allocation3], 1
    %s321 = scalar_lea.sflag [#allocation3], 1
    %322 = vsyncpa %s321, 1
    %323 = vsyncpa [#allocation5], 1
    %s324 = scalar_lea.sflag [#allocation5], 1
    %325 = vsyncpa %s324, 1

</llo_original>
